<compile_context>
chip_gen: v5e
topology: v5e:2x2
jax: 0.10.0
libtpu: 0.0.40
codegen_flags: <defaults>
</compile_context>

<pallas_src>
import functools
import math

import jax
import jax.numpy as jnp
from jax import lax
from jax.experimental import pallas as pl
from jax.experimental.pallas import tpu as pltpu

_MASK_VALUE = -1e30  # large negative (avoids -inf - -inf = NaN in online softmax)


# --------------------------------------------------------------------------
# Helpers
# --------------------------------------------------------------------------
def _round_up(n, m):
    return ((n + m - 1) // m) * m


def _pick_div(n, candidates):
    for c in candidates:
        if c <= n and n % c == 0:
            return c
    return n


def _vmem_limit_bytes():
    """Generation-aware scoped-VMEM limit (v5e/v6e: 128 MiB, v7x: 64 MiB physical)."""
    cap = 64 << 20
    try:
        cap = int(getattr(pltpu.get_tpu_info(), "vmem_capacity_bytes", cap))
    except Exception:
        pass
    return max(32 << 20, min(cap * 3 // 4, 112 << 20))


# --------------------------------------------------------------------------
# Kernel A: K = x @ Wk, V = x @ Wv   (streaming row tiles, weights resident)
# --------------------------------------------------------------------------
def _kv_proj_kernel(x_ref, wk_ref, wv_ref, k_ref, v_ref):
    x = x_ref[...]
    k_ref[...] = jnp.dot(x, wk_ref[...],
                         preferred_element_type=jnp.float32).astype(k_ref.dtype)
    v_ref[...] = jnp.dot(x, wv_ref[...],
                         preferred_element_type=jnp.float32).astype(v_ref.dtype)


def _kv_proj(x, w_key, w_value, *, tm, vmem_limit):
    t, d_in = x.shape
    d_out = w_key.shape[1]
    return pl.pallas_call(
        _kv_proj_kernel,
        out_shape=(
            jax.ShapeDtypeStruct((t, d_out), x.dtype),
            jax.ShapeDtypeStruct((t, d_out), x.dtype),
        ),
        grid_spec=pltpu.PrefetchScalarGridSpec(
            num_scalar_prefetch=0,
            grid=(t // tm,),
            in_specs=[
                pl.BlockSpec((tm, d_in), lambda i: (i, 0)),
                pl.BlockSpec((d_in, d_out), lambda i: (0, 0)),   # weights resident
                pl.BlockSpec((d_in, d_out), lambda i: (0, 0)),
            ],
            out_specs=[
                pl.BlockSpec((tm, d_out), lambda i: (i, 0)),
                pl.BlockSpec((tm, d_out), lambda i: (i, 0)),
            ],
        ),
        compiler_params=pltpu.CompilerParams(
            dimension_semantics=("parallel",),
            vmem_limit_bytes=vmem_limit,
        ),
    )(x, w_key, w_value)


# --------------------------------------------------------------------------
# Kernel B (path 1): fully fused projection + attention, everything resident.
# --------------------------------------------------------------------------
def _fused_kernel(x_ref, wk_ref, wv_ref, o_ref, *, scale, seq_len, needs_mask):
    x = x_ref[...]
    k = jnp.dot(x, wk_ref[...], preferred_element_type=jnp.float32)
    v = jnp.dot(x, wv_ref[...], preferred_element_type=jnp.float32)
    q = k * scale  # queries == keys per module spec; scale Q, not the score matrix
    s = lax.dot_general(q, k, dimension_numbers=(((1,), (1,)), ((), ())),
                        preferred_element_type=jnp.float32)
    if needs_mask:
        col = lax.broadcasted_iota(jnp.int32, s.shape, 1)
        s = jnp.where(col < seq_len, s, _MASK_VALUE)
    m = jnp.max(s, axis=-1, keepdims=True)
    p = jnp.exp(s - m)
    denom = jnp.sum(p, axis=-1, keepdims=True)
    o = jnp.dot(p, v, preferred_element_type=jnp.float32)
    o_ref[...] = (o * pl.reciprocal(denom, approx=True)).astype(o_ref.dtype)


def _fused_small(x_pad, w_key, w_value, *, scale, seq_len, needs_mask, vmem_limit):
    t_pad = x_pad.shape[0]
    d_out = w_key.shape[1]
    kernel = functools.partial(_fused_kernel, scale=scale, seq_len=seq_len,
                               needs_mask=needs_mask)
    return pl.pallas_call(
        kernel,
        out_shape=jax.ShapeDtypeStruct((t_pad, d_out), x_pad.dtype),
        compiler_params=pltpu.CompilerParams(vmem_limit_bytes=vmem_limit),
    )(x_pad, w_key, w_value)


# --------------------------------------------------------------------------
# Kernel C (path 2): full-resident K/V fast path (no kv axis, no online softmax).
# K is resident; the Q tile is sliced from it in-kernel (queries == keys).
# --------------------------------------------------------------------------
def _resident_attn_kernel(k_ref, v_ref, o_ref, *, scale, seq_len, tq, needs_mask):
    row0 = pl.multiple_of(pl.program_id(0) * tq, tq)
    q = k_ref[pl.ds(row0, tq), :] * scale
    s = lax.dot_general(q, k_ref[...], dimension_numbers=(((1,), (1,)), ((), ())),
                        preferred_element_type=jnp.float32)
    if needs_mask:
        col = lax.broadcasted_iota(jnp.int32, s.shape, 1)
        s = jnp.where(col < seq_len, s, _MASK_VALUE)
    m = jnp.max(s, axis=-1, keepdims=True)
    p = jnp.exp(s - m)
    denom = jnp.sum(p, axis=-1, keepdims=True)
    o = jnp.dot(p, v_ref[...], preferred_element_type=jnp.float32)
    o_ref[...] = (o * pl.reciprocal(denom, approx=True)).astype(o_ref.dtype)


def _resident_attention(k, v, *, scale, tq, seq_len, needs_mask, vmem_limit):
    t_pad, d_out = k.shape
    kernel = functools.partial(_resident_attn_kernel, scale=scale, seq_len=seq_len,
                               tq=tq, needs_mask=needs_mask)
    return pl.pallas_call(
        kernel,
        out_shape=jax.ShapeDtypeStruct((t_pad, d_out), k.dtype),
        grid_spec=pltpu.PrefetchScalarGridSpec(
            num_scalar_prefetch=0,
            grid=(t_pad // tq,),
            in_specs=[
                pl.BlockSpec((t_pad, d_out), lambda i: (0, 0)),  # K resident, DMA'd once
                pl.BlockSpec((t_pad, d_out), lambda i: (0, 0)),  # V resident, DMA'd once
            ],
            out_specs=pl.BlockSpec((tq, d_out), lambda i: (i, 0)),
        ),
        compiler_params=pltpu.CompilerParams(
            dimension_semantics=("parallel",),
            vmem_limit_bytes=vmem_limit,
        ),
    )(k, v)


# --------------------------------------------------------------------------
# Kernel D (path 3): flash-style online softmax over a (q, kv) grid.
# --------------------------------------------------------------------------
def _flash_kernel(q_ref, k_ref, v_ref, o_ref, m_sc, l_sc, acc_sc,
                  *, scale, seq_len, tk, needs_mask):
    kv = pl.program_id(1)

    @pl.when(kv == 0)
    def _():
        m_sc[...] = jnp.full_like(m_sc, -jnp.inf)
        l_sc[...] = jnp.zeros_like(l_sc)
        acc_sc[...] = jnp.zeros_like(acc_sc)

    q = q_ref[...] * scale                               # scale Q (tq*d), not S (tq*tk)
    s = lax.dot_general(q, k_ref[...],
                        dimension_numbers=(((1,), (1,)), ((), ())),
                        preferred_element_type=jnp.float32)
    if needs_mask:
        col = kv * tk + lax.broadcasted_iota(jnp.int32, s.shape, 1)
        s = jnp.where(col < seq_len, s, _MASK_VALUE)

    m_prev = m_sc[...]
    m_new = jnp.maximum(m_prev, jnp.max(s, axis=-1, keepdims=True))
    alpha = jnp.exp(m_prev - m_new)
    p = jnp.exp(s - m_new)
    l_sc[...] = alpha * l_sc[...] + jnp.sum(p, axis=-1, keepdims=True)
    acc_sc[...] = alpha * acc_sc[...] + jnp.dot(p, v_ref[...],
                                                preferred_element_type=jnp.float32)
    m_sc[...] = m_new

    @pl.when(kv == pl.num_programs(1) - 1)
    def _():
        o_ref[...] = (acc_sc[...] *
                      pl.reciprocal(l_sc[...], approx=True)).astype(o_ref.dtype)


def _flash_attention(k, v, *, scale, tq, tk, seq_len, needs_mask, vmem_limit):
    t_pad, d_out = k.shape
    kernel = functools.partial(_flash_kernel, scale=scale, seq_len=seq_len,
                               tk=tk, needs_mask=needs_mask)
    return pl.pallas_call(
        kernel,
        out_shape=jax.ShapeDtypeStruct((t_pad, d_out), k.dtype),
        grid_spec=pltpu.PrefetchScalarGridSpec(
            num_scalar_prefetch=0,
            grid=(t_pad // tq, t_pad // tk),
            in_specs=[
                pl.BlockSpec((tq, d_out), lambda qi, ki: (qi, 0)),  # Q tile (== K rows)
                pl.BlockSpec((tk, d_out), lambda qi, ki: (ki, 0)),  # K tile
                pl.BlockSpec((tk, d_out), lambda qi, ki: (ki, 0)),  # V tile
            ],
            out_specs=pl.BlockSpec((tq, d_out), lambda qi, ki: (qi, 0)),
            scratch_shapes=[
                pltpu.VMEM((tq, 1), jnp.float32),      # running max m_i
                pltpu.VMEM((tq, 1), jnp.float32),      # running denom l_i
                pltpu.VMEM((tq, d_out), jnp.float32),  # f32 accumulator
            ],
        ),
        compiler_params=pltpu.CompilerParams(
            dimension_semantics=("parallel", "arbitrary"),
            vmem_limit_bytes=vmem_limit,
        ),
    )(k, k, v)


# --------------------------------------------------------------------------
# Wrapper
# --------------------------------------------------------------------------
def self_attention_v2(x, w_key, w_value):
    """Forward pass of SelfAttention_v2 (weights are (d_in, d_out), no bias).

    Per the reference module, queries are produced with W_key (W_query exists
    but is unused by forward()), so the projected K array doubles as Q.
    """
    t, d_in = x.shape
    d_out = w_key.shape[1]
    scale = 1.0 / math.sqrt(d_out)
    vmem_limit = _vmem_limit_bytes()
    budget = vmem_limit // 2  # headroom for double-buffering / compiler temporaries

    # Pad T so tiles stay MXU / store friendly; padded keys are masked in-kernel.
    if t <= 256:
        t_pad = _round_up(t, 8)
        tq = t_pad
    else:
        t_pad = _round_up(t, 128)
        # keep >= 2 q tiles so v7x's two TensorCores both get work
        tq = 256 if (t_pad % 256 == 0 and t_pad >= 512) else 128
    needs_mask = t_pad != t

    x_pad = x if not needs_mask else jnp.zeros((t_pad, d_in), x.dtype).at[:t, :].set(x)

    # ---- path 1: fully fused single call (no intermediate K/V in HBM) ----
    if t_pad <= 256:
        out = _fused_small(x_pad, w_key, w_value, scale=scale, seq_len=t,
                           needs_mask=needs_mask, vmem_limit=vmem_limit)
        return out[:t] if needs_mask else out

    # ---- shared projection: K (== Q) and V, streaming row tiles ----
    tm = _pick_div(t_pad, (2048, 1024, 512, 256, 128))
    while tm > 128 and 8 * tm * (d_in + 2 * d_out) > budget:
        tm //= 2
    k, v = _kv_proj(x_pad, w_key, w_value, tm=tm, vmem_limit=vmem_limit)

    # ---- path 2: full-resident K/V fast path (K/V read from HBM once) ----
    resident_bytes = 4 * (4 * t_pad * d_out     # K + V resident (x2 safety margin)
                          + 2 * tq * t_pad      # scores + probs in f32
                          + 4 * tq * d_out)     # q / out tiles and f32 temporaries
    if resident_bytes <= budget:
        out = _resident_attention(k, v, scale=scale, tq=tq, seq_len=t,
                                  needs_mask=needs_mask, vmem_limit=vmem_limit)
    else:
        # ---- path 3: flash-style online softmax ----
        tk = _pick_div(t_pad, (512, 256, 128))
        out = _flash_attention(k, v, scale=scale, tq=tq, tk=tk, seq_len=t,
                               needs_mask=needs_mask, vmem_limit=vmem_limit)
    return out[:t] if needs_mask else out


# --------------------------------------------------------------------------
# Pure-JAX reference matching the torch forward exactly (high precision).
# --------------------------------------------------------------------------
def _self_attention_v2_ref(x, w_key, w_value):
    keys = jnp.dot(x, w_key, precision=lax.Precision.HIGHEST)
    queries = keys  # forward() uses W_key for queries too
    values = jnp.dot(x, w_value, precision=lax.Precision.HIGHEST)
    scores = jnp.dot(queries, keys.T, precision=lax.Precision.HIGHEST)
    weights = jax.nn.softmax(scores / (keys.shape[-1] ** 0.5), axis=-1)
    return jnp.dot(weights, values, precision=lax.Precision.HIGHEST)


if __name__ == "__main__":
    key = jax.random.PRNGKey(0)
    k1, k2, k3, k4 = jax.random.split(key, 4)

    seq, d_in, d_out = 8, 32, 16
    x = jax.random.normal(k1, (seq, d_in), dtype=jnp.float32)
    # W_query exists in the module but is unused by forward(); created for parity only.
    w_query = 0.1 * jax.random.normal(k2, (d_in, d_out), dtype=jnp.float32)  # noqa: F841
    w_key = 0.1 * jax.random.normal(k3, (d_in, d_out), dtype=jnp.float32)
    w_value = 0.1 * jax.random.normal(k4, (d_in, d_out), dtype=jnp.float32)

    out = self_attention_v2(x, w_key, w_value)
    jax.block_until_ready(out)

    ref = _self_attention_v2_ref(x, w_key, w_value)
    assert out.shape == (seq, d_out) and out.dtype == x.dtype
    # DEFAULT-precision MXU matmuls (bf16 passes) + approx reciprocal -> looser
    # tolerance than the f32 HIGHEST reference (per review, precision relaxed).
    assert jnp.allclose(out, ref, atol=2e-2, rtol=2e-2), "mismatch vs reference"

    # Also exercise the padding + padded-key masking path (T not a multiple of 8).
    seq2 = 12
    x2 = jax.random.normal(k1, (seq2, d_in), dtype=jnp.float32)
    out2 = self_attention_v2(x2, w_key, w_value)
    jax.block_until_ready(out2)
    ref2 = _self_attention_v2_ref(x2, w_key, w_value)
    assert out2.shape == (seq2, d_out)
    assert jnp.allclose(out2, ref2, atol=2e-2, rtol=2e-2), "mismatch vs reference (masked)"

    print("KERNEL_OK")
</pallas_src>

<mosaic_0001>
module attributes {stable_mosaic.version = 11 : i64} {
  func.func @_fused_kernel(%arg0: memref<8x32xf32, #tpu.memory_space<vmem>>, %arg1: memref<32x16xf32, #tpu.memory_space<vmem>>, %arg2: memref<32x16xf32, #tpu.memory_space<vmem>>, %arg3: memref<8x16xf32, #tpu.memory_space<vmem>>) attributes {dimension_semantics = [], scalar_prefetch = 0 : i64, scratch_operands = 0 : i64, tpu.core_type = #tpu.core_type<tc>} {
    %c0 = arith.constant 0 : index
    %c0_0 = arith.constant 0 : index
    %0 = vector.load %arg0[%c0, %c0_0] : memref<8x32xf32, #tpu.memory_space<vmem>>, vector<8x32xf32>
    %c0_1 = arith.constant 0 : index
    %c0_2 = arith.constant 0 : index
    %1 = vector.load %arg1[%c0_1, %c0_2] : memref<32x16xf32, #tpu.memory_space<vmem>>, vector<32x16xf32>
    %cst = arith.constant dense<0.000000e+00> : vector<8x16xf32>
    %2 = tpu.matmul %0, %1, %cst {dimension_numbers = #tpu.dot_dimension_numbers<[1], [0], [0], [1], [0, 0, 1, 1], [], []>} : vector<8x32xf32>, vector<32x16xf32>, vector<8x16xf32> -> vector<8x16xf32>
    %c0_3 = arith.constant 0 : index
    %c0_4 = arith.constant 0 : index
    %3 = vector.load %arg2[%c0_3, %c0_4] : memref<32x16xf32, #tpu.memory_space<vmem>>, vector<32x16xf32>
    %cst_5 = arith.constant dense<0.000000e+00> : vector<8x16xf32>
    %4 = tpu.matmul %0, %3, %cst_5 {dimension_numbers = #tpu.dot_dimension_numbers<[1], [0], [0], [1], [0, 0, 1, 1], [], []>} : vector<8x32xf32>, vector<32x16xf32>, vector<8x16xf32> -> vector<8x16xf32>
    %cst_6 = arith.constant 2.500000e-01 : f32
    %5 = vector.broadcast %cst_6 : f32 to vector<8x16xf32>
    %6 = arith.mulf %2, %5 : vector<8x16xf32>
    %cst_7 = arith.constant dense<0.000000e+00> : vector<8x8xf32>
    %7 = tpu.matmul %6, %2, %cst_7 {dimension_numbers = #tpu.dot_dimension_numbers<[1], [1], [0], [0], [0, 0, 1, 0], [], []>} : vector<8x16xf32>, vector<8x16xf32>, vector<8x8xf32> -> vector<8x8xf32>
    %cst_8 = arith.constant dense<0xFF800000> : vector<8xf32>
    %8 = vector.multi_reduction <maximumf>, %7, %cst_8 [1] : vector<8x8xf32> to vector<8xf32>
    %9 = vector.shape_cast %8 : vector<8xf32> to vector<8x1xf32>
    %10 = vector.broadcast %9 : vector<8x1xf32> to vector<8x8xf32>
    %11 = arith.subf %7, %10 : vector<8x8xf32>
    %12 = math.exp %11 : vector<8x8xf32>
    %cst_9 = arith.constant dense<0.000000e+00> : vector<8xf32>
    %13 = vector.multi_reduction <add>, %12, %cst_9 [1] : vector<8x8xf32> to vector<8xf32>
    %14 = vector.shape_cast %13 : vector<8xf32> to vector<8x1xf32>
    %cst_10 = arith.constant dense<0.000000e+00> : vector<8x16xf32>
    %15 = tpu.matmul %12, %4, %cst_10 {dimension_numbers = #tpu.dot_dimension_numbers<[1], [0], [0], [1], [0, 0, 1, 1], [], []>} : vector<8x8xf32>, vector<8x16xf32>, vector<8x16xf32> -> vector<8x16xf32>
    %16 = tpu.reciprocal %14 {approx = true} : vector<8x1xf32> -> vector<8x1xf32>
    %17 = vector.broadcast %16 : vector<8x1xf32> to vector<8x16xf32>
    %18 = arith.mulf %15, %17 : vector<8x16xf32>
    %c0_11 = arith.constant 0 : index
    %c0_12 = arith.constant 0 : index
    %19 = vector.load %arg3[%c0_11, %c0_12] : memref<8x16xf32, #tpu.memory_space<vmem>>, vector<8x16xf32>
    tpu.vector_store %arg3[%c0_11, %c0_12], %18 {strides = array<i32>} : memref<8x16xf32, #tpu.memory_space<vmem>>, vector<8x16xf32>,
    return
  }
}

</mosaic_0001>

<llo_original>
// kernel: tpu_custom_call.1
$region0: #{tpu_custom_call.1}
  #allocation0 [shape = 'u32[]', space=smem, size = 0x4, offset = 0x4, fixed_abs, tag = 'smem constant byte address 0x4 - core index']
  #allocation1 [shape = 'u32[72,128]{1,0:T(1,128)}', space=vmem, size = 0x9000, scoped, tag = 'internal scratch']
  %s0 = inlined_call_operand.vmem [shape: f32[8,32], index: 0, kind: input, shape index: {}]
  %s1 = inlined_call_operand.vmem [shape: f32[32,16], index: 1, kind: input, shape index: {}]
  %s2 = inlined_call_operand.vmem [shape: f32[32,16], index: 2, kind: input, shape index: {}]
  %s3 = inlined_call_operand.hbm [shape: f32[8,16], index: 3, kind: output, shape index: {}]
  %s4 = sld [smem:[#allocation0]]
  $region22: #{tpu_custom_call.1} parent=0
    _
  %s6 = ssub.s32 1, %s4
  %s7 = scalar_select 0, %s6, %s4
  $region1: #{tpu_custom_call.1} parent=0
    #allocation2 [shape = 'u8[4096]{0}', space=vmem, size = 0x1000, scoped, tag = 'output window, operand 0, single buffered']
    #allocation3 [shape = 's32[1]{0}', space=sflag, size = 0x4, scoped, tag = 'scoped memory for tpu_custom_call.1']
    %8 = vsyncpa [#allocation3], 0
    // Predicated region
    $region2: #{tpu_custom_call.1} parent=1 // pred_check
      _
    $region3: #{tpu_custom_call.1} parent=1 // pred_check_branch
      %10 = sbr.rel (0) target = $region5
    $region4: #{tpu_custom_call.1} parent=1 // pred_region
      _
    $region5: #{tpu_custom_call.1} parent=1 // pred_fallthru
      _
    // Predicated region
    $region6: #{tpu_custom_call.1} parent=1 // pred_check
      _
    $region7: #{tpu_custom_call.1} parent=1 // pred_check_branch
      %12 = sbr.rel (0) target = $region9
    $region8: #{tpu_custom_call.1} parent=1 // pred_region
      _
    $region9: #{tpu_custom_call.1} parent=1 // pred_fallthru
      _
    // Predicated region
    $region10: #{tpu_custom_call.1} parent=1 // pred_check
      _
    $region11: #{tpu_custom_call.1} parent=1 // pred_check_branch
      %14 = sbr.rel (0) target = $region13
    $region12: #{tpu_custom_call.1} parent=1 // pred_region
      _
    $region13: #{tpu_custom_call.1} parent=1 // pred_fallthru
      _
    %v15 = vld [vmem:[%s0] sm:$0xff]
    %v16 = vld [vmem:[%s1] sm:$0xff]
    %v17 = vld [vmem:[%s1 + $0x8] sm:$0xff]
    %v18 = vld [vmem:[%s1 + $0x10] sm:$0xff]
    %v19 = vld [vmem:[%s1 + $0x18] sm:$0xff]
    %vm20 = vcmask 261120
    %v22 = vsel %vm20, %v15, 0
    %24 = vmatpush.msra.mxu0 0.0
    %25 = vmatpush.msra.mxu0 0.0
    %26 = vmatpush.msra.mxu0 0.0
    %27 = vmatpush.msra.mxu0 0.0
    %28 = vmatpush.msra.mxu0 0.0
    %29 = vmatpush.msra.mxu0 0.0
    %30 = vmatpush.msra.mxu0 0.0
    %31 = vmatpush.msra.mxu0 0.0
    %32 = vmatpush.msra.mxu0 0.0
    %33 = vmatpush.msra.mxu0 0.0
    %34 = vmatpush.msra.mxu0 0.0
    %35 = vmatpush.msra.mxu0 0.0
    %36 = vmatpush.msra.mxu0 %v19
    %37 = vmatpush.msra.mxu0 %v18
    %38 = vmatpush.msra.mxu0 %v17
    %39 = vmatpush.msra.mxu0 %v16
    %40 = vmatmul.f32.gmra.mxu0 %v22
    %v41 = vpop.f32.mrf.mxu0
    %v42 = vadd.f32 0.0, %v41
    %43 = vdwg.mxu0
    %v44 = vld [vmem:[%s2] sm:$0xff]
    %v45 = vld [vmem:[%s2 + $0x8] sm:$0xff]
    %v46 = vld [vmem:[%s2 + $0x10] sm:$0xff]
    %v47 = vld [vmem:[%s2 + $0x18] sm:$0xff]
    %48 = vmatpush.msra.mxu0 0.0
    %49 = vmatpush.msra.mxu0 0.0
    %50 = vmatpush.msra.mxu0 0.0
    %51 = vmatpush.msra.mxu0 0.0
    %52 = vmatpush.msra.mxu0 0.0
    %53 = vmatpush.msra.mxu0 0.0
    %54 = vmatpush.msra.mxu0 0.0
    %55 = vmatpush.msra.mxu0 0.0
    %56 = vmatpush.msra.mxu0 0.0
    %57 = vmatpush.msra.mxu0 0.0
    %58 = vmatpush.msra.mxu0 0.0
    %59 = vmatpush.msra.mxu0 0.0
    %60 = vmatpush.msra.mxu0 %v47
    %61 = vmatpush.msra.mxu0 %v46
    %62 = vmatpush.msra.mxu0 %v45
    %63 = vmatpush.msra.mxu0 %v44
    %64 = vmatmul.f32.gmra.mxu0 %v22
    %v65 = vpop.f32.mrf.mxu0
    %v66 = vadd.f32 0.0, %v65
    %67 = vdwg.mxu0
    %v68 = vmul.f32 %v42, 0.25
    %vm69 = vcmask 130048
    %v71 = vsel %vm69, %v68, 0
    %v74 = vsel %vm69, %v42, 0
    %76 = vmatpush.xpose.msra.mxu0 0.0
    %77 = vmatpush.xpose.msra.mxu0 0.0
    %78 = vmatpush.xpose.msra.mxu0 0.0
    %79 = vmatpush.xpose.msra.mxu0 0.0
    %80 = vmatpush.xpose.msra.mxu0 0.0
    %81 = vmatpush.xpose.msra.mxu0 0.0
    %82 = vmatpush.xpose.msra.mxu0 0.0
    %83 = vmatpush.xpose.msra.mxu0 0.0
    %84 = vmatpush.xpose.msra.mxu0 0.0
    %85 = vmatpush.xpose.msra.mxu0 0.0
    %86 = vmatpush.xpose.msra.mxu0 0.0
    %87 = vmatpush.xpose.msra.mxu0 0.0
    %88 = vmatpush.xpose.msra.mxu0 0.0
    %89 = vmatpush.xpose.msra.mxu0 0.0
    %90 = vmatpush.xpose.msra.mxu0 0.0
    %91 = vmatpush.xpose.msra.mxu0 %v74
    %92 = vmatmul.f32.gmra.mxu0 %v71
    %v93 = vpop.f32.mrf.mxu0
    %v94 = vadd.f32 0.0, %v93
    %95 = vdwg.mxu0
    %vm96 = vcmask 64512
    %v97 = vsel %vm96, %v94, -inf
    %98 = vmax.xlane.f32.xlu0 %v97
    %v99 = vpop.xlane.xlu0 %98
    %v100 = vsub.f32 %v94, %v99
    %v101 = vmul.f32 %v100, 1.442695
    %v102 = vpow.pop %v101
    %v103 = vsel %vm96, %v102, 0.0
    %104 = vadd.xlane.f32.xlu0 %v103
    %v105 = vpop.xlane.xlu0 %104
    %v107 = vsel %vm96, %v102, 0
    %109 = vmatpush.msra.mxu0 0.0
    %110 = vmatpush.msra.mxu0 0.0
    %111 = vmatpush.msra.mxu0 0.0
    %112 = vmatpush.msra.mxu0 0.0
    %113 = vmatpush.msra.mxu0 0.0
    %114 = vmatpush.msra.mxu0 0.0
    %115 = vmatpush.msra.mxu0 0.0
    %116 = vmatpush.msra.mxu0 0.0
    %117 = vmatpush.msra.mxu0 0.0
    %118 = vmatpush.msra.mxu0 0.0
    %119 = vmatpush.msra.mxu0 0.0
    %120 = vmatpush.msra.mxu0 0.0
    %121 = vmatpush.msra.mxu0 0.0
    %122 = vmatpush.msra.mxu0 0.0
    %123 = vmatpush.msra.mxu0 0.0
    %124 = vmatpush.msra.mxu0 %v66
    %125 = vmatmul.f32.gmra.mxu0 %v107
    %v126 = vpop.f32.mrf.mxu0
    %v127 = vadd.f32 0.0, %v126
    %128 = vdwg.mxu0
    %v129 = vrcp.pop %v105
    %v130 = vmul.f32 %v127, %v129
    %131 = vst.msk [vmem:[#allocation2] sm:$0xff] %vm69, %v130
    // Predicated region
    $region14: #{tpu_custom_call.1} parent=1 // pred_check
      _
    $region15: #{tpu_custom_call.1} parent=1 // pred_check_branch
      %133 = sbr.rel (0) target = $region17
    $region16: #{tpu_custom_call.1} parent=1 // pred_region
      %135 = vsyncadd [#allocation3], 0
      %s137 = sshll.u32 [#allocation2], 4
      %s138 = int_to_ptr.vmem [resolvable:$true] %s137
      %s139 = sshll.u32 %s3, 4
      %s140 = int_to_ptr.hbm [resolvable:$true] %s139
      %142 = dma.vmem_to_hbm [thread:$0]  %s138, 128, %s140, [#allocation3]
    $region17: #{tpu_custom_call.1} parent=1 // pred_fallthru
      _
    // Predicated region
    $region18: #{tpu_custom_call.1} parent=1 // pred_check
      _
    $region19: #{tpu_custom_call.1} parent=1 // pred_check_branch
      %144 = sbr.rel (0) target = $region21
    $region20: #{tpu_custom_call.1} parent=1 // pred_region
      %146 = dma.done [#allocation3], 128
    $region21: #{tpu_custom_call.1} parent=1 // pred_fallthru
      _
    %147 = vsyncpa [#allocation3], 1

</llo_original>
